<compile_context>
chip_gen: v5e
topology: v5e:2x2
jax: 0.10.0
libtpu: 0.0.40
codegen_flags: <defaults>
</compile_context>

<pallas_src>
import functools
import numpy as np
import jax
import jax.numpy as jnp
from jax.experimental import pallas as pl
from jax.experimental.pallas import tpu as pltpu


_VMEM_LIMIT_BYTES = 32 * 1024 * 1024          # explicit scoped-VMEM limit (fits v5e/v6e/v7x)
_APPLY_BUFFER_BUDGET = 16 * 1024 * 1024       # cap on 2x double-buffered (x + out) blocks


# ----------------------------------------------------------------------------
# Parameter initialization (deterministic, synthetic -- shapes match __init__)
# ----------------------------------------------------------------------------
def init_params(dim, seed=0):
    key = jax.random.PRNGKey(seed)
    k1, k2, k3 = jax.random.split(key, 3)
    half = dim // 2

    def conv_init(k, out_c, in_c, kh, kw):
        # PyTorch Conv2d default: kaiming_uniform(a=sqrt(5)) => bound 1/sqrt(fan_in)
        fan_in = in_c * kh * kw
        bound = 1.0 / float(np.sqrt(fan_in))
        kw_key, kb_key = jax.random.split(k)
        w = jax.random.uniform(kw_key, (out_c, in_c, kh, kw), jnp.float32, -bound, bound)
        b = jax.random.uniform(kb_key, (out_c,), jnp.float32, -bound, bound)
        return w, b

    p = {}
    p["conv1x1_w"], p["conv1x1_b"] = conv_init(k1, half, dim, 1, 1)   # dim    -> dim//2
    p["conv3x3_w"], p["conv3x3_b"] = conv_init(k2, dim, half, 3, 3)   # dim//2 -> dim
    p["con3x3_w"], p["con3x3_b"] = conv_init(k3, dim, dim, 3, 3)      # dim    -> dim
    p["mix1_w"] = jnp.asarray(-1.0, jnp.float32)    # Mix(m=-1)
    p["mix2_w"] = jnp.asarray(-0.6, jnp.float32)    # Mix(m=-0.6)
    return p


# ----------------------------------------------------------------------------
# Channel-tile size: largest divisor of C (full C, or a multiple of 8 so the
# second-minor block dim stays legal) whose apply-pass VMEM buffering
# (x block + out block, each double-buffered) fits the budget.
# ----------------------------------------------------------------------------
def _choose_ct(c, h, w, itemsize, budget=_APPLY_BUFFER_BUDGET):
    per_c = 4 * h * w * itemsize      # 2 buffers each for the x block and the out block
    cands = [d for d in range(1, c + 1) if c % d == 0 and (d == c or d % 8 == 0)]
    fitting = [d for d in cands if d * per_c <= budget]
    return max(fitting) if fitting else min(cands)


# ----------------------------------------------------------------------------
# Pallas kernel 1: fused adaptive avg-pool (over W) + adaptive max-pool (over H)
# emitted as a single lane-dense slab x_hw = concat([mean_W, max_H], axis=-1).
# ----------------------------------------------------------------------------
def _pool_kernel(x_ref, xhw_ref, *, h):
    x = x_ref[0].astype(jnp.float32)            # (Ct, H, W) upcast in-register; f32 accumulation
    xhw_ref[0, :, :h] = jnp.mean(x, axis=2)     # AdaptiveAvgPool2d((None, 1)) -> (Ct, H)
    xhw_ref[0, :, h:] = jnp.max(x, axis=1)      # AdaptiveMaxPool2d((1, None)) -> (Ct, W)


def pool_pallas(x, ct):
    n, c, h, w = x.shape
    isz = x.dtype.itemsize
    return pl.pallas_call(
        functools.partial(_pool_kernel, h=h),
        out_shape=jax.ShapeDtypeStruct((n, c, h + w), jnp.float32),
        grid=(n, c // ct),
        in_specs=[pl.BlockSpec((1, ct, h, w), lambda b, cc: (b, cc, 0, 0))],
        out_specs=pl.BlockSpec((1, ct, h + w), lambda b, cc: (b, cc, 0)),
        compiler_params=pltpu.CompilerParams(
            dimension_semantics=("parallel", "parallel"),
            vmem_limit_bytes=_VMEM_LIMIT_BYTES),
        cost_estimate=pl.CostEstimate(
            flops=2 * n * c * h * w,
            transcendentals=0,
            bytes_accessed=n * c * h * w * isz + n * c * (h + w) * 4),
    )(x)


# ----------------------------------------------------------------------------
# Pallas kernel 2: per-channel outer-product attention map + residual apply
#   out = x + x * sigmoid(a_c (H,1) * b_c (1,W)),  in x's native dtype.
# ----------------------------------------------------------------------------
def _apply_kernel(x_ref, a_ref, b_ref, o_ref):
    xf = x_ref[0].astype(jnp.float32)           # (Ct, H, W)
    a = a_ref[0][:, :, None]                    # (Ct, H, 1) f32
    b = b_ref[0][:, None, :]                    # (Ct, 1, W) f32
    z = a * b
    # sigmoid(z) = 1 / (1 + exp(-z)); exp + approx reciprocal both run on the EUP.
    m = pl.reciprocal(1.0 + jnp.exp(-z), approx=True)
    o_ref[0] = (xf * (1.0 + m)).astype(o_ref.dtype)


def apply_pallas(x, a_vec, b_vec, ct):
    n, c, h, w = x.shape
    isz = x.dtype.itemsize
    return pl.pallas_call(
        _apply_kernel,
        out_shape=jax.ShapeDtypeStruct((n, c, h, w), x.dtype),
        grid=(n, c // ct),
        in_specs=[pl.BlockSpec((1, ct, h, w), lambda b, cc: (b, cc, 0, 0)),
                  pl.BlockSpec((1, ct, h), lambda b, cc: (b, cc, 0)),
                  pl.BlockSpec((1, ct, w), lambda b, cc: (b, cc, 0))],
        out_specs=pl.BlockSpec((1, ct, h, w), lambda b, cc: (b, cc, 0, 0)),
        input_output_aliases={0: 0},            # out reuses x's HBM buffer (x is donated)
        compiler_params=pltpu.CompilerParams(
            dimension_semantics=("parallel", "parallel"),
            vmem_limit_bytes=_VMEM_LIMIT_BYTES),
        cost_estimate=pl.CostEstimate(
            flops=4 * n * c * h * w,
            transcendentals=n * c * h * w,
            bytes_accessed=2 * n * c * h * w * isz + n * c * (h + w) * 4),
    )(x, a_vec, b_vec)


# ----------------------------------------------------------------------------
# Tiny per-channel 1-D conv chain (conv1x1 + GELU + conv3x3 + Mix + con3x3).
# TODO(synk): deliberately kept in plain JAX/XLA -- it is a few KFLOP on
# (C, H+W) vectors and would waste the MXU / add launches inside Pallas.
# ----------------------------------------------------------------------------
def _conv2d(x, w, padding=0):
    return jax.lax.conv_general_dilated(
        x, w, window_strides=(1, 1),
        padding=[(padding, padding), (padding, padding)],
        dimension_numbers=("NCHW", "OIHW", "NCHW"))


def _conv_chain(params, x_hw, h):
    # x_hw: (B, C, H+W) f32; [:, :, :h] = avg over W, [:, :, h:] = max over H
    x_h = x_hw[:, :, :h]
    x_w = x_hw[:, :, h:]
    y = _conv2d(x_hw[..., None], params["conv1x1_w"]) + params["conv1x1_b"][None, :, None, None]
    y = jax.nn.gelu(y, approximate=False)[..., 0]                    # exact GELU, (B, C/2, H+W)
    x1 = y[:, :, :h][..., None]                                      # (B, C/2, H, 1)
    x2 = y[:, :, h:][:, :, None, :]                                  # (B, C/2, 1, W)
    x1 = _conv2d(x1, params["conv3x3_w"], padding=1) + params["conv3x3_b"][None, :, None, None]
    x2 = _conv2d(x2, params["conv3x3_w"], padding=1) + params["conv3x3_b"][None, :, None, None]
    s1 = jax.nn.sigmoid(params["mix1_w"])
    s2 = jax.nn.sigmoid(params["mix2_w"])
    m1 = x_h[..., None] * s1 + x1 * (1.0 - s1)                       # Mix(m=-1)
    m2 = x_w[:, :, None, :] * s2 + x2 * (1.0 - s2)                   # Mix(m=-0.6)
    a4 = _conv2d(m1, params["con3x3_w"], padding=1) + params["con3x3_b"][None, :, None, None]
    b4 = _conv2d(m2, params["con3x3_w"], padding=1) + params["con3x3_b"][None, :, None, None]
    return a4[..., 0], b4[:, :, 0, :]                                # (B,C,H), (B,C,W) f32


# ----------------------------------------------------------------------------
# AHAttention forward (x is donated so the apply kernel's aliased output can
# reuse its buffer in place).
# ----------------------------------------------------------------------------
@functools.partial(jax.jit, donate_argnums=(1,))
def ah_attention_forward(params, x):
    n, c, h, w = x.shape
    ct = _choose_ct(c, h, w, x.dtype.itemsize)
    x_hw = pool_pallas(x, ct)                         # Pallas kernel 1: (B, C, H+W) f32
    a_vec, b_vec = _conv_chain(params, x_hw, h)       # tiny XLA conv chain
    return apply_pallas(x, a_vec, b_vec, ct)          # Pallas kernel 2: out in x.dtype


# Pure-JAX reference (same conv chain, pooling/apply in jnp) for validation.
def ah_attention_reference(params, x):
    x = x.astype(jnp.float32)
    h = x.shape[2]
    x_h = jnp.mean(x, axis=3)
    x_w = jnp.max(x, axis=2)
    x_hw = jnp.concatenate([x_h, x_w], axis=2)
    a_vec, b_vec = _conv_chain(params, x_hw, h)
    matrix = jax.nn.sigmoid(a_vec[:, :, :, None] * b_vec[:, :, None, :])
    return x + x * matrix


if __name__ == "__main__":
    B, DIM, H, W = 2, 8, 16, 16
    params = init_params(DIM, seed=0)
    x = jax.random.normal(jax.random.PRNGKey(0), (B, DIM, H, W), jnp.float32)
    x_np = np.asarray(x)                                  # keep a host copy (x is donated below)

    ref = ah_attention_reference(params, x)               # computed before donation

    out = jax.block_until_ready(ah_attention_forward(params, x))
    assert out.shape == (B, DIM, H, W), out.shape
    assert out.dtype == jnp.float32
    assert bool(jnp.all(jnp.isfinite(out)))
    # approx-reciprocal sigmoid -> 1e-3 tolerance vs the exact f32 reference
    np.testing.assert_allclose(np.asarray(out), np.asarray(ref), rtol=1e-3, atol=1e-3)

    # Native-dtype (bf16) ingestion path: kernels read/write x as bf16 (half the DMA bytes).
    x_bf = jnp.asarray(x_np, jnp.bfloat16)
    out_bf = jax.block_until_ready(ah_attention_forward(params, x_bf))
    assert out_bf.shape == (B, DIM, H, W)
    assert out_bf.dtype == jnp.bfloat16
    assert bool(jnp.all(jnp.isfinite(out_bf.astype(jnp.float32))))
    np.testing.assert_allclose(np.asarray(out_bf, dtype=np.float32), np.asarray(ref),
                               rtol=1e-1, atol=1e-1)

    print("KERNEL_OK")
</pallas_src>

<mosaic_0001>
module attributes {stable_mosaic.version = 11 : i64} {
  func.func @_pool_kernel(%arg0: i32, %arg1: i32, %arg2: memref<1x8x16x16xf32, #tpu.memory_space<vmem>>, %arg3: memref<1x8x32xf32, #tpu.memory_space<vmem>>) attributes {dimension_semantics = [#tpu.dimension_semantics<parallel>, #tpu.dimension_semantics<parallel>], iteration_bounds = array<i64: 2, 1>, scalar_prefetch = 0 : i64, scratch_operands = 0 : i64, tpu.core_type = #tpu.core_type<tc>, window_params = [{transform_indices = @transform_0, window_bounds = array<i64: 1, 8, 16, 16>}, {transform_indices = @transform_1, window_bounds = array<i64: 1, 8, 32>}]} {
    %c0 = arith.constant 0 : index
    %c0_0 = arith.constant 0 : index
    %c0_1 = arith.constant 0 : index
    %c0_2 = arith.constant 0 : index
    %0 = vector.load %arg2[%c0, %c0_0, %c0_1, %c0_2] : memref<1x8x16x16xf32, #tpu.memory_space<vmem>>, vector<1x8x16x16xf32>
    %1 = vector.shape_cast %0 : vector<1x8x16x16xf32> to vector<8x16x16xf32>
    %cst = arith.constant dense<0.000000e+00> : vector<8x16xf32>
    %2 = vector.multi_reduction <add>, %1, %cst [2] : vector<8x16x16xf32> to vector<8x16xf32>
    %cst_3 = arith.constant 1.600000e+01 : f32
    %3 = vector.broadcast %cst_3 : f32 to vector<8x16xf32>
    %4 = arith.divf %2, %3 : vector<8x16xf32>
    %c0_4 = arith.constant 0 : index
    %c0_5 = arith.constant 0 : index
    %c0_6 = arith.constant 0 : index
    %5 = vector.load %arg3[%c0_4, %c0_5, %c0_6] : memref<1x8x32xf32, #tpu.memory_space<vmem>>, vector<1x8x16xf32>
    %6 = vector.shape_cast %5 : vector<1x8x16xf32> to vector<8x16xf32>
    %7 = vector.shape_cast %4 : vector<8x16xf32> to vector<1x8x16xf32>
    tpu.vector_store %arg3[%c0_4, %c0_5, %c0_6], %7 {strides = array<i32>} : memref<1x8x32xf32, #tpu.memory_space<vmem>>, vector<1x8x16xf32>,
    %cst_7 = arith.constant dense<0xFF800000> : vector<8x16xf32>
    %8 = vector.multi_reduction <maximumf>, %1, %cst_7 [1] : vector<8x16x16xf32> to vector<8x16xf32>
    %c0_8 = arith.constant 0 : index
    %c0_9 = arith.constant 0 : index
    %c16 = arith.constant 16 : index
    %9 = vector.load %arg3[%c0_8, %c0_9, %c16] : memref<1x8x32xf32, #tpu.memory_space<vmem>>, vector<1x8x16xf32>
    %10 = vector.shape_cast %9 : vector<1x8x16xf32> to vector<8x16xf32>
    %11 = vector.shape_cast %8 : vector<8x16xf32> to vector<1x8x16xf32>
    tpu.vector_store %arg3[%c0_8, %c0_9, %c16], %11 {strides = array<i32>} : memref<1x8x32xf32, #tpu.memory_space<vmem>>, vector<1x8x16xf32>,
    return
  }
  func.func @transform_0(%arg0: i32, %arg1: i32) -> (i32, i32, i32, i32) {
    %c0_i32 = arith.constant 0 : i32
    %c0_i32_0 = arith.constant 0 : i32
    %c0_i32_1 = arith.constant 0 : i32
    return %arg0, %arg1, %c0_i32, %c0_i32_0 : i32, i32, i32, i32
  }
  func.func @transform_1(%arg0: i32, %arg1: i32) -> (i32, i32, i32) {
    %c0_i32 = arith.constant 0 : i32
    %c0_i32_0 = arith.constant 0 : i32
    return %arg0, %arg1, %c0_i32 : i32, i32, i32
  }
}

module attributes {stable_mosaic.version = 11 : i64} {
  func.func @_apply_kernel(%arg0: i32, %arg1: i32, %arg2: memref<1x8x16x16xf32, #tpu.memory_space<vmem>>, %arg3: memref<1x8x16xf32, #tpu.memory_space<vmem>>, %arg4: memref<1x8x16xf32, #tpu.memory_space<vmem>>, %arg5: memref<1x8x16x16xf32, #tpu.memory_space<vmem>>) attributes {dimension_semantics = [#tpu.dimension_semantics<parallel>, #tpu.dimension_semantics<parallel>], iteration_bounds = array<i64: 2, 1>, scalar_prefetch = 0 : i64, scratch_operands = 0 : i64, tpu.core_type = #tpu.core_type<tc>, window_params = [{transform_indices = @transform_0, window_bounds = array<i64: 1, 8, 16, 16>}, {transform_indices = @transform_1, window_bounds = array<i64: 1, 8, 16>}, {transform_indices = @transform_2, window_bounds = array<i64: 1, 8, 16>}, {transform_indices = @transform_3, window_bounds = array<i64: 1, 8, 16, 16>}]} {
    %c0 = arith.constant 0 : index
    %c0_0 = arith.constant 0 : index
    %c0_1 = arith.constant 0 : index
    %c0_2 = arith.constant 0 : index
    %0 = vector.load %arg2[%c0, %c0_0, %c0_1, %c0_2] : memref<1x8x16x16xf32, #tpu.memory_space<vmem>>, vector<1x8x16x16xf32>
    %1 = vector.shape_cast %0 : vector<1x8x16x16xf32> to vector<8x16x16xf32>
    %c0_3 = arith.constant 0 : index
    %c0_4 = arith.constant 0 : index
    %c0_5 = arith.constant 0 : index
    %2 = vector.load %arg3[%c0_3, %c0_4, %c0_5] : memref<1x8x16xf32, #tpu.memory_space<vmem>>, vector<1x8x16xf32>
    %3 = vector.shape_cast %2 : vector<1x8x16xf32> to vector<8x16xf32>
    %4 = vector.shape_cast %3 : vector<8x16xf32> to vector<8x16x1xf32>
    %c0_6 = arith.constant 0 : index
    %c0_7 = arith.constant 0 : index
    %c0_8 = arith.constant 0 : index
    %5 = vector.load %arg4[%c0_6, %c0_7, %c0_8] : memref<1x8x16xf32, #tpu.memory_space<vmem>>, vector<1x8x16xf32>
    %6 = vector.shape_cast %5 : vector<1x8x16xf32> to vector<8x16xf32>
    %7 = vector.shape_cast %6 : vector<8x16xf32> to vector<8x1x16xf32>
    %8 = vector.broadcast %4 : vector<8x16x1xf32> to vector<8x16x16xf32>
    %9 = vector.broadcast %7 : vector<8x1x16xf32> to vector<8x16x16xf32>
    %10 = arith.mulf %8, %9 : vector<8x16x16xf32>
    %cst = arith.constant 0.000000e+00 : f32
    %11 = vector.broadcast %cst : f32 to vector<8x16x16xf32>
    %12 = arith.subf %11, %10 : vector<8x16x16xf32>
    %13 = math.exp %12 : vector<8x16x16xf32>
    %cst_9 = arith.constant 1.000000e+00 : f32
    %14 = vector.broadcast %cst_9 : f32 to vector<8x16x16xf32>
    %15 = arith.addf %14, %13 : vector<8x16x16xf32>
    %16 = tpu.reciprocal %15 {approx = true} : vector<8x16x16xf32> -> vector<8x16x16xf32>
    %cst_10 = arith.constant 1.000000e+00 : f32
    %17 = vector.broadcast %cst_10 : f32 to vector<8x16x16xf32>
    %18 = arith.addf %17, %16 : vector<8x16x16xf32>
    %19 = arith.mulf %1, %18 : vector<8x16x16xf32>
    %c0_11 = arith.constant 0 : index
    %c0_12 = arith.constant 0 : index
    %c0_13 = arith.constant 0 : index
    %c0_14 = arith.constant 0 : index
    %20 = vector.load %arg5[%c0_11, %c0_12, %c0_13, %c0_14] : memref<1x8x16x16xf32, #tpu.memory_space<vmem>>, vector<1x8x16x16xf32>
    %21 = vector.shape_cast %20 : vector<1x8x16x16xf32> to vector<8x16x16xf32>
    %22 = vector.shape_cast %19 : vector<8x16x16xf32> to vector<1x8x16x16xf32>
    tpu.vector_store %arg5[%c0_11, %c0_12, %c0_13, %c0_14], %22 {strides = array<i32>} : memref<1x8x16x16xf32, #tpu.memory_space<vmem>>, vector<1x8x16x16xf32>,
    return
  }
  func.func @transform_0(%arg0: i32, %arg1: i32) -> (i32, i32, i32, i32) {
    %c0_i32 = arith.constant 0 : i32
    %c0_i32_0 = arith.constant 0 : i32
    %c0_i32_1 = arith.constant 0 : i32
    return %arg0, %arg1, %c0_i32, %c0_i32_0 : i32, i32, i32, i32
  }
  func.func @transform_1(%arg0: i32, %arg1: i32) -> (i32, i32, i32) {
    %c0_i32 = arith.constant 0 : i32
    %c0_i32_0 = arith.constant 0 : i32
    return %arg0, %arg1, %c0_i32 : i32, i32, i32
  }
  func.func @transform_2(%arg0: i32, %arg1: i32) -> (i32, i32, i32) {
    %c0_i32 = arith.constant 0 : i32
    %c0_i32_0 = arith.constant 0 : i32
    return %arg0, %arg1, %c0_i32 : i32, i32, i32
  }
  func.func @transform_3(%arg0: i32, %arg1: i32) -> (i32, i32, i32, i32) {
    %c0_i32 = arith.constant 0 : i32
    %c0_i32_0 = arith.constant 0 : i32
    %c0_i32_1 = arith.constant 0 : i32
    return %arg0, %arg1, %c0_i32, %c0_i32_0 : i32, i32, i32, i32
  }
}

</mosaic_0001>

<llo_original>
// kernel: ah_attention_forward.2
$region0: #{ah_attention_forward.2}
  #allocation0 [shape = 'u32[]', space=smem, size = 0x4, offset = 0x4, fixed_abs, tag = 'smem constant byte address 0x4 - core index']
  #allocation1 [shape = 'u32[72,128]{1,0:T(1,128)}', space=vmem, size = 0x9000, scoped, tag = 'internal scratch']
  %s0 = inlined_call_operand.hbm [shape: f32[2,8,16,16], index: 0, kind: input, shape index: {}]
  %s1 = inlined_call_operand.vmem [shape: f32[2,8,32], index: 1, kind: output, shape index: {}]
  %s2 = sld [smem:[#allocation0]]
  $region41: #{ah_attention_forward.2} parent=0
    _
  %s4 = ssub.s32 1, %s2
  %s5 = scalar_select 0, %s4, %s2
  $region1: #{ah_attention_forward.2} parent=0
    #allocation2 [shape = 'u8[131072]{0}', space=vmem, size = 0x20000, scoped, tag = 'input window, operand 0']
    #allocation3 [shape = 's32[2]{0}', space=sflag, size = 0x8, scoped, tag = 'scoped memory for ah_attention_forward.2']
    %6 = vsyncpa [#allocation3], 0
    %s7 = scalar_lea.sflag [#allocation3], 1
    %8 = vsyncpa %s7, 0
    loop: start=0, step=1, limit=4
    $region2: #{ah_attention_forward.2} parent=1 // loop_pre_header
      _
    $region3: #{ah_attention_forward.2} parent=1 // loop_header
      %s10 = sphi 0, %s14
      %p11 = scmp.ge.s32.totalorder %s10, 4
      %s17 = sphi 0, %s29
      %s18 = sphi 0, %s25
      %s19 = sphi 0, %s17
      %s20 = sphi 0, %s18
      %s21 = sphi 0, %s19
      %s22 = sphi 0, %s20
      %s34 = sphi 0, %s36
      %s37 = sphi 0, %s34
      %s38 = sphi 0, %s37
      %s54 = sphi 0, %s38
      %s62 = sphi 0, %s64
      %s65 = sphi 0, %s62
      %s66 = sphi 0, %s65
      %s82 = sphi 0, %s66
    $region4: #{ah_attention_forward.2} parent=1 // loop_header_branch
      %13 = sbr.rel (%p11) target = $region8
    $region5: #{ah_attention_forward.2} parent=1 // loop_body
      %s15 = ssub.s32 %s10, 1
      %s16 = ssub.s32 %s10, 2
      %s23 = sadd.s32 1, %s18
      %p24 = scmp.ge.s32.totalorder %s23, 1
      %s25 = scalar_select %p24, 0, %s23
      %s26 = sadd.s32 1, %s17
      %s27 = scalar_select %p24, %s26, %s17
      %p28 = scmp.ge.s32.totalorder %s27, 2
      %s29 = scalar_select %p28, 0, %s27
      %s30 = ssub.s32 %s17, %s29
      %s31 = ssub.s32 %s18, %s25
      %s32 = sor.u32 %s30, %s31
      %p33 = scmp.eq.s32.totalorder %s32, 0
      %s35 = sadd.s32 %s34, 1
      %s36 = scalar_select %p33, %s34, %s35
      %p39 = pneg %p33
      %p40 = scmp.eq.s32.totalorder %s10, 1
      %p41 = por %p39, %p40
      %p42 = scmp.ne.s32.totalorder %s34, %s37
      %p43 = scmp.eq.s32.totalorder %s10, 0
      %p44 = por %p42, %p43
      %p45 = scmp.ne.s32.totalorder %s34, %s37
      %p46 = scmp.eq.s32.totalorder %s15, 1
      %p47 = por %p45, %p46
      %p48 = scmp.ne.s32.totalorder %s37, %s38
      %p49 = scmp.eq.s32.totalorder %s15, 0
      %p50 = por %p48, %p49
      %p51 = scmp.ne.s32.totalorder %s37, %s38
      %p52 = scmp.eq.s32.totalorder %s16, 1
      %p53 = por %p51, %p52
      %p55 = scmp.ne.s32.totalorder %s38, %s54
      %p56 = scmp.eq.s32.totalorder %s16, 0
      %p57 = por %p55, %p56
      %s58 = ssub.s32 %s17, %s29
      %s59 = ssub.s32 %s18, %s25
      %s60 = sor.u32 %s58, %s59
      %p61 = scmp.eq.s32.totalorder %s60, 0
      %s63 = sadd.s32 %s62, 1
      %s64 = scalar_select %p61, %s62, %s63
      %p67 = pneg %p61
      %p68 = scmp.eq.s32.totalorder %s10, 1
      %p69 = por %p67, %p68
      %p70 = scmp.ne.s32.totalorder %s62, %s65
      %p71 = scmp.eq.s32.totalorder %s10, 0
      %p72 = por %p70, %p71
      %p73 = scmp.ne.s32.totalorder %s62, %s65
      %p74 = scmp.eq.s32.totalorder %s15, 1
      %p75 = por %p73, %p74
      %p76 = scmp.ne.s32.totalorder %s65, %s66
      %p77 = scmp.eq.s32.totalorder %s15, 0
      %p78 = por %p76, %p77
      %p79 = scmp.ne.s32.totalorder %s65, %s66
      %p80 = scmp.eq.s32.totalorder %s16, 1
      %p81 = por %p79, %p80
      %p83 = scmp.ne.s32.totalorder %s66, %s82
      %p84 = scmp.eq.s32.totalorder %s16, 0
      %p85 = por %p83, %p84
      %p86 = scmp.le.s32.totalorder 1, %s10
      %p87 = scmp.lt.s32.totalorder %s10, 3
      %p88 = pnand %p86, %p87
      %p89 = pneg %p88
      // Predicated region
      $region9: #{ah_attention_forward.2} parent=5 // pred_check
        _
      $region10: #{ah_attention_forward.2} parent=5 // pred_check_branch
        %91 = sbr.rel (%p88) target = $region12
      $region11: #{ah_attention_forward.2} parent=5 // pred_region
        %s92 = ssub.s32 %s10, 1
      $region12: #{ah_attention_forward.2} parent=5 // pred_fallthru
        _
      %p93 = scmp.lt.s32.totalorder %s10, 2
      // Predicated region
      $region13: #{ah_attention_forward.2} parent=5 // pred_check
        %p94 = pneg %p93
      $region14: #{ah_attention_forward.2} parent=5 // pred_check_branch
        %96 = sbr.rel (%p94) target = $region16
      $region15: #{ah_attention_forward.2} parent=5 // pred_region
        // Predicated region
        $region17: #{ah_attention_forward.2} parent=15 // pred_check
          %p97 = pneg %p44
        $region18: #{ah_attention_forward.2} parent=15 // pred_check_branch
          %99 = sbr.rel (%p97) target = $region20
        $region19: #{ah_attention_forward.2} parent=15 // pred_region
          %s100 = sand.u32 %s34, 1
          %s101 = scalar_lea.sflag [#allocation3], %s100
          %s102 = sand.u32 %s34, 1
          %s103 = smul.addr %s102, 128
          %s104 = scalar_lea.vmem [#allocation2], %s103
          %s105 = smul.u32 8, %s18
          %107 = vsyncadd %s101, 0
          %s108 = smul.addr %s105, 2
          %s109 = smul.addr %s17, 16
          %s110 = sadd.s32 %s108, %s109
          %s111 = smul.addr %s110, 8
          %s112 = scalar_lea.hbm %s0, %s111
          %s113 = sshll.u32 %s112, 4
          %s114 = int_to_ptr.hbm [resolvable:$true] %s113
          %s115 = sshll.u32 %s104, 4
          %s116 = int_to_ptr.vmem [resolvable:$true] %s115
          %121 = dma.hbm_to_vmem [thread:$0]  %s114, 2048, %s116, %s101, 128, 128, 8
        $region20: #{ah_attention_forward.2} parent=15 // pred_fallthru
          _
      $region16: #{ah_attention_forward.2} parent=5 // pred_fallthru
        _
      %p122 = scmp.le.s32.totalorder 1, %s10
      %p123 = scmp.lt.s32.totalorder %s10, 3
      %p124 = pnand %p122, %p123
      %p125 = pneg %p124
      // Predicated region
      $region21: #{ah_attention_forward.2} parent=5 // pred_check
        _
      $region22: #{ah_attention_forward.2} parent=5 // pred_check_branch
        %127 = sbr.rel (%p124) target = $region24
      $region23: #{ah_attention_forward.2} parent=5 // pred_region
        %s128 = ssub.s32 %s10, 1
        %s129 = sand.u32 %s37, 1
        %s130 = scalar_lea.sflag [#allocation3], %s129
        %s131 = sand.u32 %s37, 1
        %s132 = smul.addr %s131, 128
        %s133 = scalar_lea.vmem [#allocation2], %s132
        // Predicated region
        $region25: #{ah_attention_forward.2} parent=23 // pred_check
          %p134 = pneg %p50
        $region26: #{ah_attention_forward.2} parent=23 // pred_check_branch
          %136 = sbr.rel (%p134) target = $region28
        $region27: #{ah_attention_forward.2} parent=23 // pred_region
          %138 = dma.done %s130, 2048
        $region28: #{ah_attention_forward.2} parent=23 // pred_fallthru
          _
        %s139 = sand.u32 %s37, 1
        %s140 = scalar_lea.sflag [#allocation3], %s139
        %s141 = sand.u32 %s37, 1
        %s142 = smul.addr %s141, 128
        %s143 = scalar_lea.vmem [#allocation2], %s142
        %p144 = pneg %p50
        %p145 = pneg %p47
        %p146 = pneg %p78
        %p147 = pneg %p75
        %p148 = scmp.lt.s32.totalorder %s19, 1
        %s149 = scalar_select %p148, %s19, 1
        %p150 = scmp.lt.s32.totalorder %s20, 0
        %s151 = scalar_select %p150, %s20, 0
        %s152 = sadd.s32 %s151, %s149
        %s153 = smul.addr %s152, 8
        %s154 = scalar_lea.vmem %s1, %s153
        %s155 = smul.u32 8, %s20
        %p156 = scmp.lt.s32.totalorder %s19, 1
        %s157 = scalar_select %p156, %s19, 1
        %p158 = scmp.lt.s32.totalorder %s20, 0
        %s159 = scalar_select %p158, %s20, 0
        %s160 = sadd.s32 %s159, %s157
        %s161 = smul.addr %s160, 8
        %s162 = scalar_lea.vmem %s1, %s161
        %v163 = vld [vmem:[%s133] sm:$0xff]
        %v164 = vld [vmem:[%s133 + $0x8] sm:$0xff]
        %v165 = vld [vmem:[%s133 + $0x10] sm:$0xff]
        %v166 = vld [vmem:[%s133 + $0x18] sm:$0xff]
        %v167 = vld [vmem:[%s133 + $0x20] sm:$0xff]
        %v168 = vld [vmem:[%s133 + $0x28] sm:$0xff]
        %v169 = vld [vmem:[%s133 + $0x30] sm:$0xff]
        %v170 = vld [vmem:[%s133 + $0x38] sm:$0xff]
        %v171 = vld [vmem:[%s133 + $0x40] sm:$0xff]
        %v172 = vld [vmem:[%s133 + $0x48] sm:$0xff]
        %v173 = vld [vmem:[%s133 + $0x50] sm:$0xff]
        %v174 = vld [vmem:[%s133 + $0x58] sm:$0xff]
        %v175 = vld [vmem:[%s133 + $0x60] sm:$0xff]
        %v176 = vld [vmem:[%s133 + $0x68] sm:$0xff]
        %v177 = vld [vmem:[%s133 + $0x70] sm:$0xff]
        %v178 = vld [vmem:[%s133 + $0x78] sm:$0xff]
        %vm179 = vcmask 130048
        %v180 = vsel %vm179, %v163, 0.0
        %181 = vadd.xlane.f32.xlu0 %v180
        %v182 = vpop.xlane.xlu0 %181
        %v183 = vsel %vm179, %v164, 0.0
        %184 = vadd.xlane.f32.xlu0 %v183
        %v185 = vpop.xlane.xlu0 %184
        %v186 = vsel %vm179, %v165, 0.0
        %187 = vadd.xlane.f32.xlu0 %v186
        %v188 = vpop.xlane.xlu0 %187
        %v189 = vsel %vm179, %v166, 0.0
        %190 = vadd.xlane.f32.xlu0 %v189
        %v191 = vpop.xlane.xlu0 %190
        %v192 = vsel %vm179, %v167, 0.0
        %193 = vadd.xlane.f32.xlu0 %v192
        %v194 = vpop.xlane.xlu0 %193
        %v195 = vsel %vm179, %v168, 0.0
        %196 = vadd.xlane.f32.xlu0 %v195
        %v197 = vpop.xlane.xlu0 %196
        %v198 = vsel %vm179, %v169, 0.0
        %199 = vadd.xlane.f32.xlu0 %v198
        %v200 = vpop.xlane.xlu0 %199
        %v201 = vsel %vm179, %v170, 0.0
        %202 = vadd.xlane.f32.xlu0 %v201
        %v203 = vpop.xlane.xlu0 %202
        %v204 = vsel %vm179, %v171, 0.0
        %205 = vadd.xlane.f32.xlu0 %v204
        %v206 = vpop.xlane.xlu0 %205
        %v207 = vsel %vm179, %v172, 0.0
        %208 = vadd.xlane.f32.xlu0 %v207
        %v209 = vpop.xlane.xlu0 %208
        %v210 = vsel %vm179, %v173, 0.0
        %211 = vadd.xlane.f32.xlu0 %v210
        %v212 = vpop.xlane.xlu0 %211
        %v213 = vsel %vm179, %v174, 0.0
        %214 = vadd.xlane.f32.xlu0 %v213
        %v215 = vpop.xlane.xlu0 %214
        %v216 = vsel %vm179, %v175, 0.0
        %217 = vadd.xlane.f32.xlu0 %v216
        %v218 = vpop.xlane.xlu0 %217
        %v219 = vsel %vm179, %v176, 0.0
        %220 = vadd.xlane.f32.xlu0 %v219
        %v221 = vpop.xlane.xlu0 %220
        %v222 = vsel %vm179, %v177, 0.0
        %223 = vadd.xlane.f32.xlu0 %v222
        %v224 = vpop.xlane.xlu0 %223
        %v225 = vsel %vm179, %v178, 0.0
        %226 = vadd.xlane.f32.xlu0 %v225
        %v227 = vpop.xlane.xlu0 %226
        %v228 = vrcp.pop 16.0
        %v229 = vmul.f32 16.0, %v228
        %v230 = vsub.f32 1.0, %v229
        %v231 = vmul.f32 %v228, %v230
        %v232 = vadd.f32 %v228, %v231
        %vm233 = vweird.f32 %v228
        %v234 = vsel %vm233, %v228, %v232
        %v235 = vmul.f32 %v182, %v234
        %v236 = vmul.f32 %v185, %v234
        %v237 = vmul.f32 %v188, %v234
        %v238 = vmul.f32 %v191, %v234
        %v239 = vmul.f32 %v194, %v234
        %v240 = vmul.f32 %v197, %v234
        %v241 = vmul.f32 %v200, %v234
        %v242 = vmul.f32 %v203, %v234
        %v243 = vmul.f32 %v206, %v234
        %v244 = vmul.f32 %v209, %v234
        %v245 = vmul.f32 %v212, %v234
        %v246 = vmul.f32 %v215, %v234
        %v247 = vmul.f32 %v218, %v234
        %v248 = vmul.f32 %v221, %v234
        %v249 = vmul.f32 %v224, %v234
        %v250 = vmul.f32 %v227, %v234
        %v267 = vlaneseq
        %v268 = vand.u32 %v267, 127
        %v269 = vperm.slane %v235, %v268
        %v270 = vadd.s32 %v268, 4294967288
        %v271 = vperm.slane %v236, %v270
        %vm272 = vcmask 130112
        %v273 = vsel %vm272, %v271, %v269
        %v274 = vperm.slane %v237, %v268
        %v275 = vperm.slane %v238, %v270
        %v276 = vsel %vm272, %v275, %v274
        %v277 = vperm.slane %v239, %v268
        %v278 = vperm.slane %v240, %v270
        %v279 = vsel %vm272, %v278, %v277
        %v280 = vperm.slane %v241, %v268
        %v281 = vperm.slane %v242, %v270
        %v282 = vsel %vm272, %v281, %v280
        %v283 = vperm.slane %v243, %v268
        %v284 = vperm.slane %v244, %v270
        %v285 = vsel %vm272, %v284, %v283
        %v286 = vperm.slane %v245, %v268
        %v287 = vperm.slane %v246, %v270
        %v288 = vsel %vm272, %v287, %v286
        %v289 = vperm.slane %v247, %v268
        %v290 = vperm.slane %v248, %v270
        %v291 = vsel %vm272, %v290, %v289
        %v292 = vperm.slane %v249, %v268
        %v293 = vperm.slane %v250, %v270
        %v294 = vsel %vm272, %v293, %v292
        %vm295 = vcmask 1041409
        %v296 = vsel %vm295, %v276, %v273
        %vm297 = vcmask 1042434
        %v298 = vsel %vm297, %v279, %v296
        %vm299 = vcmask 1043459
        %v300 = vsel %vm299, %v282, %v298
        %vm301 = vcmask 1044484
        %v302 = vsel %vm301, %v285, %v300
        %vm303 = vcmask 1045509
        %v304 = vsel %vm303, %v288, %v302
        %vm305 = vcmask 1046534
        %v306 = vsel %vm305, %v291, %v304
        %vm307 = vcmask 1047559
        %v308 = vsel %vm307, %v294, %v306
        %310 = vst.msk [vmem:[%s162] sm:$0xff] %vm179, %v308
        %v311 = vsel %vm179, %v163, -inf
        %v312 = vsel %vm179, %v164, -inf
        %v313 = vmax.f32 %v311, %v312
        %v314 = vrot.slane %v313, 4
        %v315 = vmax.f32 %v313, %v314
        %v316 = vrot.slane %v315, 2
        %v317 = vmax.f32 %v315, %v316
        %v318 = vrot.slane %v317, 1
        %v319 = vmax.f32 %v317, %v318
        %v320 = vsel %vm179, %v165, -inf
        %v321 = vsel %vm179, %v166, -inf
        %v322 = vmax.f32 %v320, %v321
        %v323 = vrot.slane %v322, 4
        %v324 = vmax.f32 %v322, %v323
        %v325 = vrot.slane %v324, 2
        %v326 = vmax.f32 %v324, %v325
        %v327 = vrot.slane %v326, 1
        %v328 = vmax.f32 %v326, %v327
        %v329 = vsel %vm179, %v167, -inf
        %v330 = vsel %vm179, %v168, -inf
        %v331 = vmax.f32 %v329, %v330
        %v332 = vrot.slane %v331, 4
        %v333 = vmax.f32 %v331, %v332
        %v334 = vrot.slane %v333, 2
        %v335 = vmax.f32 %v333, %v334
        %v336 = vrot.slane %v335, 1
        %v337 = vmax.f32 %v335, %v336
        %v338 = vsel %vm179, %v169, -inf
        %v339 = vsel %vm179, %v170, -inf
        %v340 = vmax.f32 %v338, %v339
        %v341 = vrot.slane %v340, 4
        %v342 = vmax.f32 %v340, %v341
        %v343 = vrot.slane %v342, 2
        %v344 = vmax.f32 %v342, %v343
        %v345 = vrot.slane %v344, 1
        %v346 = vmax.f32 %v344, %v345
        %v347 = vsel %vm179, %v171, -inf
        %v348 = vsel %vm179, %v172, -inf
        %v349 = vmax.f32 %v347, %v348
        %v350 = vrot.slane %v349, 4
        %v351 = vmax.f32 %v349, %v350
        %v352 = vrot.slane %v351, 2
        %v353 = vmax.f32 %v351, %v352
        %v354 = vrot.slane %v353, 1
        %v355 = vmax.f32 %v353, %v354
        %v356 = vsel %vm179, %v173, -inf
        %v357 = vsel %vm179, %v174, -inf
        %v358 = vmax.f32 %v356, %v357
        %v359 = vrot.slane %v358, 4
        %v360 = vmax.f32 %v358, %v359
        %v361 = vrot.slane %v360, 2
        %v362 = vmax.f32 %v360, %v361
        %v363 = vrot.slane %v362, 1
        %v364 = vmax.f32 %v362, %v363
        %v365 = vsel %vm179, %v175, -inf
        %v366 = vsel %vm179, %v176, -inf
        %v367 = vmax.f32 %v365, %v366
        %v368 = vrot.slane %v367, 4
        %v369 = vmax.f32 %v367, %v368
        %v370 = vrot.slane %v369, 2
        %v371 = vmax.f32 %v369, %v370
        %v372 = vrot.slane %v371, 1
        %v373 = vmax.f32 %v371, %v372
        %v374 = vsel %vm179, %v177, -inf
        %v375 = vsel %vm179, %v178, -inf
        %v376 = vmax.f32 %v374, %v375
        %v377 = vrot.slane %v376, 4
        %v378 = vmax.f32 %v376, %v377
        %v379 = vrot.slane %v378, 2
        %v380 = vmax.f32 %v378, %v379
        %v381 = vrot.slane %v380, 1
        %v382 = vmax.f32 %v380, %v381
        %v391 = vsel %vm295, %v328, %v319
        %v392 = vsel %vm297, %v337, %v391
        %v393 = vsel %vm299, %v346, %v392
        %v394 = vsel %vm301, %v355, %v393
        %v395 = vsel %vm303, %v364, %v394
        %v396 = vsel %vm305, %v373, %v395
        %v397 = vsel %vm307, %v382, %v396
        %398 = vrot.lane.b32.xlu0 %v397, 16
        %v399 = vpop.permute.xlu0 %398
        %vm401 = vcmask 261248
        %402 = vst.msk [vmem:[%s162] sm:$0xff] %vm401, %v399
        %p403 = scmp.lt.s32.totalorder %s19, 1
        %s404 = scalar_select %p403, %s19, 1
        %p405 = scmp.lt.s32.totalorder %s20, 0
        %s406 = scalar_select %p405, %s20, 0
        %s407 = sadd.s32 %s406, %s404
        %s408 = smul.addr %s407, 8
        %s409 = scalar_lea.vmem %s1, %s408
        // Predicated region
        $region29: #{ah_attention_forward.2} parent=23 // pred_check
          %p410 = pneg %p75
        $region30: #{ah_attention_forward.2} parent=23 // pred_check_branch
          %412 = sbr.rel (%p410) target = $region32
        $region31: #{ah_attention_forward.2} parent=23 // pred_region
          _
        $region32: #{ah_attention_forward.2} parent=23 // pred_fallthru
          _
      $region24: #{ah_attention_forward.2} parent=5 // pred_fallthru
        _
      %p413 = scmp.le.s32.totalorder 2, %s10
      // Predicated region
      $region33: #{ah_attention_forward.2} parent=5 // pred_check
        %p414 = pneg %p413
      $region34: #{ah_attention_forward.2} parent=5 // pred_check_branch
        %416 = sbr.rel (%p414) target = $region36
      $region35: #{ah_attention_forward.2} parent=5 // pred_region
        %s417 = ssub.s32 %s10, 2
        // Predicated region
        $region37: #{ah_attention_forward.2} parent=35 // pred_check
          %p418 = pneg %p81
        $region38: #{ah_attention_forward.2} parent=35 // pred_check_branch
          %420 = sbr.rel (%p418) target = $region40
        $region39: #{ah_attention_forward.2} parent=35 // pred_region
          %p421 = scmp.lt.s32.totalorder %s21, 1
          %s422 = scalar_select %p421, %s21, 1
          %p423 = scmp.lt.s32.totalorder %s22, 0
          %s424 = scalar_select %p423, %s22, 0
          %s425 = sadd.s32 %s424, %s422
          %s426 = smul.addr %s425, 8
          %s427 = scalar_lea.vmem %s1, %s426
        $region40: #{ah_attention_forward.2} parent=35 // pred_fallthru
          _
      $region36: #{ah_attention_forward.2} parent=5 // pred_fallthru
        _
    $region6: #{ah_attention_forward.2} parent=1 // loop_footer
      %s14 = sadd.s32 1, %s10
    $region7: #{ah_attention_forward.2} parent=1 // loop_footer_branch
      %9 = sbr.rel target = $region3
    $region8: #{ah_attention_forward.2} parent=1 // loop_exit
      _
    %428 = vsyncpa [#allocation3], 1
    %s429 = scalar_lea.sflag [#allocation3], 1
    %430 = vsyncpa %s429, 1

// kernel: ah_attention_forward.3
$region0: #{ah_attention_forward.3}
  #allocation0 [shape = 'u32[]', space=smem, size = 0x4, offset = 0x4, fixed_abs, tag = 'smem constant byte address 0x4 - core index']
  #allocation1 [shape = 'u32[72,128]{1,0:T(1,128)}', space=vmem, size = 0x9000, scoped, tag = 'internal scratch']
  %s0 = inlined_call_operand.hbm [shape: f32[2,8,16,16], index: 0, kind: input, shape index: {}, may-alias: {0,3}]
  %s1 = inlined_call_operand.vmem [shape: f32[2,8,16], index: 1, kind: input, shape index: {}]
  %s2 = inlined_call_operand.vmem [shape: f32[2,8,16], index: 2, kind: input, shape index: {}]
  %s3 = inlined_call_operand.hbm [shape: f32[2,8,16,16], index: 3, kind: output, shape index: {}, may-alias: {0,3}]
  %s4 = sld [smem:[#allocation0]]
  $region49: #{ah_attention_forward.3} parent=0
    _
  %s6 = ssub.s32 1, %s4
  %s7 = scalar_select 0, %s6, %s4
  $region1: #{ah_attention_forward.3} parent=0
    #allocation2 [shape = 'u8[131072]{0}', space=vmem, size = 0x20000, scoped, tag = 'input window, operand 0']
    #allocation3 [shape = 's32[2]{0}', space=sflag, size = 0x8, scoped, tag = 'scoped memory for ah_attention_forward.3']
    #allocation4 [shape = 's32[2]{0}', space=sflag, size = 0x8, scoped, tag = 'scoped memory for ah_attention_forward.3']
    #allocation5 [shape = 'u8[131072]{0}', space=vmem, size = 0x20000, scoped, tag = 'output window, operand 0']
    %8 = vsyncpa [#allocation3], 0
    %s9 = scalar_lea.sflag [#allocation3], 1
    %10 = vsyncpa %s9, 0
    %11 = vsyncpa [#allocation4], 0
    %s12 = scalar_lea.sflag [#allocation4], 1
    %13 = vsyncpa %s12, 0
    loop: start=0, step=1, limit=4
    $region2: #{ah_attention_forward.3} parent=1 // loop_pre_header
      _
    $region3: #{ah_attention_forward.3} parent=1 // loop_header
      %s15 = sphi 0, %s19
      %p16 = scmp.ge.s32.totalorder %s15, 4
      %s22 = sphi 0, %s34
      %s23 = sphi 0, %s30
      %s24 = sphi 0, %s22
      %s25 = sphi 0, %s23
      %s26 = sphi 0, %s24
      %s27 = sphi 0, %s25
      %s39 = sphi 0, %s41
      %s42 = sphi 0, %s39
      %s43 = sphi 0, %s42
      %s59 = sphi 0, %s43
      %s67 = sphi 0, %s69
      %s70 = sphi 0, %s67
      %s71 = sphi 0, %s70
      %s87 = sphi 0, %s71
      %s95 = sphi 0, %s97
      %s98 = sphi 0, %s95
      %s99 = sphi 0, %s98
      %s115 = sphi 0, %s99
      %s123 = sphi 0, %s125
      %s126 = sphi 0, %s123
      %s127 = sphi 0, %s126
      %s143 = sphi 0, %s127
    $region4: #{ah_attention_forward.3} parent=1 // loop_header_branch
      %18 = sbr.rel (%p16) target = $region8
    $region5: #{ah_attention_forward.3} parent=1 // loop_body
      %s20 = ssub.s32 %s15, 1
      %s21 = ssub.s32 %s15, 2
      %s28 = sadd.s32 1, %s23
      %p29 = scmp.ge.s32.totalorder %s28, 1
      %s30 = scalar_select %p29, 0, %s28
      %s31 = sadd.s32 1, %s22
      %s32 = scalar_select %p29, %s31, %s22
      %p33 = scmp.ge.s32.totalorder %s32, 2
      %s34 = scalar_select %p33, 0, %s32
      %s35 = ssub.s32 %s22, %s34
      %s36 = ssub.s32 %s23, %s30
      %s37 = sor.u32 %s35, %s36
      %p38 = scmp.eq.s32.totalorder %s37, 0
      %s40 = sadd.s32 %s39, 1
      %s41 = scalar_select %p38, %s39, %s40
      %p44 = pneg %p38
      %p45 = scmp.eq.s32.totalorder %s15, 1
      %p46 = por %p44, %p45
      %p47 = scmp.ne.s32.totalorder %s39, %s42
      %p48 = scmp.eq.s32.totalorder %s15, 0
      %p49 = por %p47, %p48
      %p50 = scmp.ne.s32.totalorder %s39, %s42
      %p51 = scmp.eq.s32.totalorder %s20, 1
      %p52 = por %p50, %p51
      %p53 = scmp.ne.s32.totalorder %s42, %s43
      %p54 = scmp.eq.s32.totalorder %s20, 0
      %p55 = por %p53, %p54
      %p56 = scmp.ne.s32.totalorder %s42, %s43
      %p57 = scmp.eq.s32.totalorder %s21, 1
      %p58 = por %p56, %p57
      %p60 = scmp.ne.s32.totalorder %s43, %s59
      %p61 = scmp.eq.s32.totalorder %s21, 0
      %p62 = por %p60, %p61
      %s63 = ssub.s32 %s22, %s34
      %s64 = ssub.s32 %s23, %s30
      %s65 = sor.u32 %s63, %s64
      %p66 = scmp.eq.s32.totalorder %s65, 0
      %s68 = sadd.s32 %s67, 1
      %s69 = scalar_select %p66, %s67, %s68
      %p72 = pneg %p66
      %p73 = scmp.eq.s32.totalorder %s15, 1
      %p74 = por %p72, %p73
      %p75 = scmp.ne.s32.totalorder %s67, %s70
      %p76 = scmp.eq.s32.totalorder %s15, 0
      %p77 = por %p75, %p76
      %p78 = scmp.ne.s32.totalorder %s67, %s70
      %p79 = scmp.eq.s32.totalorder %s20, 1
      %p80 = por %p78, %p79
      %p81 = scmp.ne.s32.totalorder %s70, %s71
      %p82 = scmp.eq.s32.totalorder %s20, 0
      %p83 = por %p81, %p82
      %p84 = scmp.ne.s32.totalorder %s70, %s71
      %p85 = scmp.eq.s32.totalorder %s21, 1
      %p86 = por %p84, %p85
      %p88 = scmp.ne.s32.totalorder %s71, %s87
      %p89 = scmp.eq.s32.totalorder %s21, 0
      %p90 = por %p88, %p89
      %s91 = ssub.s32 %s22, %s34
      %s92 = ssub.s32 %s23, %s30
      %s93 = sor.u32 %s91, %s92
      %p94 = scmp.eq.s32.totalorder %s93, 0
      %s96 = sadd.s32 %s95, 1
      %s97 = scalar_select %p94, %s95, %s96
      %p100 = pneg %p94
      %p101 = scmp.eq.s32.totalorder %s15, 1
      %p102 = por %p100, %p101
      %p103 = scmp.ne.s32.totalorder %s95, %s98
      %p104 = scmp.eq.s32.totalorder %s15, 0
      %p105 = por %p103, %p104
      %p106 = scmp.ne.s32.totalorder %s95, %s98
      %p107 = scmp.eq.s32.totalorder %s20, 1
      %p108 = por %p106, %p107
      %p109 = scmp.ne.s32.totalorder %s98, %s99
      %p110 = scmp.eq.s32.totalorder %s20, 0
      %p111 = por %p109, %p110
      %p112 = scmp.ne.s32.totalorder %s98, %s99
      %p113 = scmp.eq.s32.totalorder %s21, 1
      %p114 = por %p112, %p113
      %p116 = scmp.ne.s32.totalorder %s99, %s115
      %p117 = scmp.eq.s32.totalorder %s21, 0
      %p118 = por %p116, %p117
      %s119 = ssub.s32 %s22, %s34
      %s120 = ssub.s32 %s23, %s30
      %s121 = sor.u32 %s119, %s120
      %p122 = scmp.eq.s32.totalorder %s121, 0
      %s124 = sadd.s32 %s123, 1
      %s125 = scalar_select %p122, %s123, %s124
      %p128 = pneg %p122
      %p129 = scmp.eq.s32.totalorder %s15, 1
      %p130 = por %p128, %p129
      %p131 = scmp.ne.s32.totalorder %s123, %s126
      %p132 = scmp.eq.s32.totalorder %s15, 0
      %p133 = por %p131, %p132
      %p134 = scmp.ne.s32.totalorder %s123, %s126
      %p135 = scmp.eq.s32.totalorder %s20, 1
      %p136 = por %p134, %p135
      %p137 = scmp.ne.s32.totalorder %s126, %s127
      %p138 = scmp.eq.s32.totalorder %s20, 0
      %p139 = por %p137, %p138
      %p140 = scmp.ne.s32.totalorder %s126, %s127
      %p141 = scmp.eq.s32.totalorder %s21, 1
      %p142 = por %p140, %p141
      %p144 = scmp.ne.s32.totalorder %s127, %s143
      %p145 = scmp.eq.s32.totalorder %s21, 0
      %p146 = por %p144, %p145
      %p147 = scmp.le.s32.totalorder 1, %s15
      %p148 = scmp.lt.s32.totalorder %s15, 3
      %p149 = pnand %p147, %p148
      %p150 = pneg %p149
      // Predicated region
      $region9: #{ah_attention_forward.3} parent=5 // pred_check
        _
      $region10: #{ah_attention_forward.3} parent=5 // pred_check_branch
        %152 = sbr.rel (%p149) target = $region12
      $region11: #{ah_attention_forward.3} parent=5 // pred_region
        %s153 = ssub.s32 %s15, 1
      $region12: #{ah_attention_forward.3} parent=5 // pred_fallthru
        _
      %p154 = scmp.lt.s32.totalorder %s15, 2
      // Predicated region
      $region13: #{ah_attention_forward.3} parent=5 // pred_check
        %p155 = pneg %p154
      $region14: #{ah_attention_forward.3} parent=5 // pred_check_branch
        %157 = sbr.rel (%p155) target = $region16
      $region15: #{ah_attention_forward.3} parent=5 // pred_region
        // Predicated region
        $region17: #{ah_attention_forward.3} parent=15 // pred_check
          %p158 = pneg %p49
        $region18: #{ah_attention_forward.3} parent=15 // pred_check_branch
          %160 = sbr.rel (%p158) target = $region20
        $region19: #{ah_attention_forward.3} parent=15 // pred_region
          %s161 = sand.u32 %s39, 1
          %s162 = scalar_lea.sflag [#allocation3], %s161
          %s163 = sand.u32 %s39, 1
          %s164 = smul.addr %s163, 128
          %s165 = scalar_lea.vmem [#allocation2], %s164
          %s166 = smul.u32 8, %s23
          %168 = vsyncadd %s162, 0
          %s169 = smul.addr %s166, 2
          %s170 = smul.addr %s22, 16
          %s171 = sadd.s32 %s169, %s170
          %s172 = smul.addr %s171, 8
          %s173 = scalar_lea.hbm %s0, %s172
          %s174 = sshll.u32 %s173, 4
          %s175 = int_to_ptr.hbm [resolvable:$true] %s174
          %s176 = sshll.u32 %s165, 4
          %s177 = int_to_ptr.vmem [resolvable:$true] %s176
          %182 = dma.hbm_to_vmem [thread:$0]  %s175, 2048, %s177, %s162, 128, 128, 8
        $region20: #{ah_attention_forward.3} parent=15 // pred_fallthru
          _
        // Predicated region
        $region21: #{ah_attention_forward.3} parent=15 // pred_check
          %p183 = pneg %p77
        $region22: #{ah_attention_forward.3} parent=15 // pred_check_branch
          %185 = sbr.rel (%p183) target = $region24
        $region23: #{ah_attention_forward.3} parent=15 // pred_region
          %p186 = scmp.lt.s32.totalorder %s22, 1
          %s187 = scalar_select %p186, %s22, 1
          %p188 = scmp.lt.s32.totalorder %s23, 0
          %s189 = scalar_select %p188, %s23, 0
          %s190 = sadd.s32 %s189, %s187
          %s191 = smul.addr %s190, 8
          %s192 = scalar_lea.vmem %s1, %s191
        $region24: #{ah_attention_forward.3} parent=15 // pred_fallthru
          _
        // Predicated region
        $region25: #{ah_attention_forward.3} parent=15 // pred_check
          %p193 = pneg %p105
        $region26: #{ah_attention_forward.3} parent=15 // pred_check_branch
          %195 = sbr.rel (%p193) target = $region28
        $region27: #{ah_attention_forward.3} parent=15 // pred_region
          %p196 = scmp.lt.s32.totalorder %s22, 1
          %s197 = scalar_select %p196, %s22, 1
          %p198 = scmp.lt.s32.totalorder %s23, 0
          %s199 = scalar_select %p198, %s23, 0
          %s200 = sadd.s32 %s199, %s197
          %s201 = smul.addr %s200, 8
          %s202 = scalar_lea.vmem %s2, %s201
        $region28: #{ah_attention_forward.3} parent=15 // pred_fallthru
          _
      $region16: #{ah_attention_forward.3} parent=5 // pred_fallthru
        _
      %p203 = scmp.le.s32.totalorder 1, %s15
      %p204 = scmp.lt.s32.totalorder %s15, 3
      %p205 = pnand %p203, %p204
      %p206 = pneg %p205
      // Predicated region
      $region29: #{ah_attention_forward.3} parent=5 // pred_check
        _
      $region30: #{ah_attention_forward.3} parent=5 // pred_check_branch
        %208 = sbr.rel (%p205) target = $region32
      $region31: #{ah_attention_forward.3} parent=5 // pred_region
        %s209 = ssub.s32 %s15, 1
        %s210 = sand.u32 %s42, 1
        %s211 = scalar_lea.sflag [#allocation3], %s210
        %s212 = sand.u32 %s42, 1
        %s213 = smul.addr %s212, 128
        %s214 = scalar_lea.vmem [#allocation2], %s213
        // Predicated region
        $region33: #{ah_attention_forward.3} parent=31 // pred_check
          %p215 = pneg %p55
        $region34: #{ah_attention_forward.3} parent=31 // pred_check_branch
          %217 = sbr.rel (%p215) target = $region36
        $region35: #{ah_attention_forward.3} parent=31 // pred_region
          %219 = dma.done %s211, 2048
        $region36: #{ah_attention_forward.3} parent=31 // pred_fallthru
          _
        %s220 = sand.u32 %s42, 1
        %s221 = scalar_lea.sflag [#allocation3], %s220
        %s222 = sand.u32 %s42, 1
        %s223 = smul.addr %s222, 128
        %s224 = scalar_lea.vmem [#allocation2], %s223
        %p225 = pneg %p55
        %p226 = pneg %p52
        %p227 = scmp.lt.s32.totalorder %s24, 1
        %s228 = scalar_select %p227, %s24, 1
        %p229 = scmp.lt.s32.totalorder %s25, 0
        %s230 = scalar_select %p229, %s25, 0
        %s231 = sadd.s32 %s230, %s228
        %s232 = smul.addr %s231, 8
        %s233 = scalar_lea.vmem %s1, %s232
        %p234 = pneg %p83
        %p235 = pneg %p80
        %p236 = scmp.lt.s32.totalorder %s24, 1
        %s237 = scalar_select %p236, %s24, 1
        %p238 = scmp.lt.s32.totalorder %s25, 0
        %s239 = scalar_select %p238, %s25, 0
        %s240 = sadd.s32 %s239, %s237
        %s241 = smul.addr %s240, 8
        %s242 = scalar_lea.vmem %s2, %s241
        %p243 = pneg %p111
        %p244 = pneg %p108
        %p245 = pneg %p139
        %p246 = pneg %p136
        %s247 = sand.u32 %s126, 1
        %s248 = scalar_lea.sflag [#allocation4], %s247
        %s249 = sand.u32 %s126, 1
        %s250 = smul.addr %s249, 128
        %s251 = scalar_lea.vmem [#allocation5], %s250
        %s252 = smul.u32 8, %s25
        %p253 = scmp.lt.s32.totalorder %s24, 1
        %s254 = scalar_select %p253, %s24, 1
        %p255 = scmp.lt.s32.totalorder %s25, 0
        %s256 = scalar_select %p255, %s25, 0
        %s257 = sadd.s32 %s256, %s254
        %s258 = smul.addr %s257, 8
        %s259 = scalar_lea.vmem %s1, %s258
        %p260 = scmp.lt.s32.totalorder %s24, 1
        %s261 = scalar_select %p260, %s24, 1
        %p262 = scmp.lt.s32.totalorder %s25, 0
        %s263 = scalar_select %p262, %s25, 0
        %s264 = sadd.s32 %s263, %s261
        %s265 = smul.addr %s264, 8
        %s266 = scalar_lea.vmem %s2, %s265
        %s267 = smul.u32 8, %s25
        %v268 = vld [vmem:[%s214] sm:$0xff]
        %v269 = vld [vmem:[%s214 + $0x8] sm:$0xff]
        %v270 = vld [vmem:[%s214 + $0x10] sm:$0xff]
        %v271 = vld [vmem:[%s214 + $0x18] sm:$0xff]
        %v272 = vld [vmem:[%s214 + $0x20] sm:$0xff]
        %v273 = vld [vmem:[%s214 + $0x28] sm:$0xff]
        %v274 = vld [vmem:[%s214 + $0x30] sm:$0xff]
        %v275 = vld [vmem:[%s214 + $0x38] sm:$0xff]
        %v276 = vld [vmem:[%s214 + $0x40] sm:$0xff]
        %v277 = vld [vmem:[%s214 + $0x48] sm:$0xff]
        %v278 = vld [vmem:[%s214 + $0x50] sm:$0xff]
        %v279 = vld [vmem:[%s214 + $0x58] sm:$0xff]
        %v280 = vld [vmem:[%s214 + $0x60] sm:$0xff]
        %v281 = vld [vmem:[%s214 + $0x68] sm:$0xff]
        %v282 = vld [vmem:[%s214 + $0x70] sm:$0xff]
        %v283 = vld [vmem:[%s214 + $0x78] sm:$0xff]
        %v284 = vld [vmem:[%s259] sm:$0xff]
        %v285 = vperm.slane %v284, 0
        %v286 = vlaneseq
        %v287 = vshrl.u32 %v286, 7
        %289 = vset.pattern.permute.xlu0 %v287
        %290 = vperm.xlu0 %289, %v285
        %v291 = vpop.permute.xlu0 %290
        %v292 = vlaneseq
        %v293 = vshrl.u32 %v292, 7
        %v294 = vadd.s32 %v293, 8
        %295 = vset.pattern.permute.xlu0 %v294
        %296 = vperm.xlu0 %295, %v285
        %v297 = vpop.permute.xlu0 %296
        %v298 = vperm.slane %v284, 1
        %v299 = vlaneseq
        %v300 = vshrl.u32 %v299, 7
        %302 = vset.pattern.permute.xlu0 %v300
        %303 = vperm.xlu0 %302, %v298
        %v304 = vpop.permute.xlu0 %303
        %v305 = vlaneseq
        %v306 = vshrl.u32 %v305, 7
        %v307 = vadd.s32 %v306, 8
        %308 = vset.pattern.permute.xlu0 %v307
        %309 = vperm.xlu0 %308, %v298
        %v310 = vpop.permute.xlu0 %309
        %v311 = vperm.slane %v284, 2
        %v312 = vlaneseq
        %v313 = vshrl.u32 %v312, 7
        %315 = vset.pattern.permute.xlu0 %v313
        %316 = vperm.xlu0 %315, %v311
        %v317 = vpop.permute.xlu0 %316
        %v318 = vlaneseq
        %v319 = vshrl.u32 %v318, 7
        %v320 = vadd.s32 %v319, 8
        %321 = vset.pattern.permute.xlu0 %v320
        %322 = vperm.xlu0 %321, %v311
        %v323 = vpop.permute.xlu0 %322
        %v324 = vperm.slane %v284, 3
        %v325 = vlaneseq
        %v326 = vshrl.u32 %v325, 7
        %328 = vset.pattern.permute.xlu0 %v326
        %329 = vperm.xlu0 %328, %v324
        %v330 = vpop.permute.xlu0 %329
        %v331 = vlaneseq
        %v332 = vshrl.u32 %v331, 7
        %v333 = vadd.s32 %v332, 8
        %334 = vset.pattern.permute.xlu0 %v333
        %335 = vperm.xlu0 %334, %v324
        %v336 = vpop.permute.xlu0 %335
        %v337 = vperm.slane %v284, 4
        %v338 = vlaneseq
        %v339 = vshrl.u32 %v338, 7
        %341 = vset.pattern.permute.xlu0 %v339
        %342 = vperm.xlu0 %341, %v337
        %v343 = vpop.permute.xlu0 %342
        %v344 = vlaneseq
        %v345 = vshrl.u32 %v344, 7
        %v346 = vadd.s32 %v345, 8
        %347 = vset.pattern.permute.xlu0 %v346
        %348 = vperm.xlu0 %347, %v337
        %v349 = vpop.permute.xlu0 %348
        %v350 = vperm.slane %v284, 5
        %v351 = vlaneseq
        %v352 = vshrl.u32 %v351, 7
        %354 = vset.pattern.permute.xlu0 %v352
        %355 = vperm.xlu0 %354, %v350
        %v356 = vpop.permute.xlu0 %355
        %v357 = vlaneseq
        %v358 = vshrl.u32 %v357, 7
        %v359 = vadd.s32 %v358, 8
        %360 = vset.pattern.permute.xlu0 %v359
        %361 = vperm.xlu0 %360, %v350
        %v362 = vpop.permute.xlu0 %361
        %v363 = vperm.slane %v284, 6
        %v364 = vlaneseq
        %v365 = vshrl.u32 %v364, 7
        %367 = vset.pattern.permute.xlu0 %v365
        %368 = vperm.xlu0 %367, %v363
        %v369 = vpop.permute.xlu0 %368
        %v370 = vlaneseq
        %v371 = vshrl.u32 %v370, 7
        %v372 = vadd.s32 %v371, 8
        %373 = vset.pattern.permute.xlu0 %v372
        %374 = vperm.xlu0 %373, %v363
        %v375 = vpop.permute.xlu0 %374
        %v376 = vperm.slane %v284, 7
        %v377 = vlaneseq
        %v378 = vshrl.u32 %v377, 7
        %380 = vset.pattern.permute.xlu0 %v378
        %381 = vperm.xlu0 %380, %v376
        %v382 = vpop.permute.xlu0 %381
        %v383 = vlaneseq
        %v384 = vshrl.u32 %v383, 7
        %v385 = vadd.s32 %v384, 8
        %386 = vset.pattern.permute.xlu0 %v385
        %387 = vperm.xlu0 %386, %v376
        %v388 = vpop.permute.xlu0 %387
        %v389 = vld [vmem:[%s266] sm:$0xff]
        %v391 = vrot.slane %v389, 1
        %v392 = vrot.slane %v389, 2
        %v393 = vrot.slane %v389, 3
        %v394 = vrot.slane %v389, 4
        %v395 = vrot.slane %v389, 5
        %v396 = vrot.slane %v389, 6
        %v397 = vrot.slane %v389, 7
        %v398 = vperm.slane %v389, 0
        %v399 = vperm.slane %v391, 0
        %v400 = vperm.slane %v392, 0
        %v401 = vperm.slane %v393, 0
        %v402 = vperm.slane %v394, 0
        %v403 = vperm.slane %v395, 0
        %v404 = vperm.slane %v396, 0
        %v405 = vperm.slane %v397, 0
        %v414 = vmul.f32 %v291, %v398
        %v415 = vmul.f32 %v297, %v398
        %v416 = vmul.f32 %v304, %v399
        %v417 = vmul.f32 %v310, %v399
        %v418 = vmul.f32 %v317, %v400
        %v419 = vmul.f32 %v323, %v400
        %v420 = vmul.f32 %v330, %v401
        %v421 = vmul.f32 %v336, %v401
        %v422 = vmul.f32 %v343, %v402
        %v423 = vmul.f32 %v349, %v402
        %v424 = vmul.f32 %v356, %v403
        %v425 = vmul.f32 %v362, %v403
        %v426 = vmul.f32 %v369, %v404
        %v427 = vmul.f32 %v375, %v404
        %v428 = vmul.f32 %v382, %v405
        %v429 = vmul.f32 %v388, %v405
        %v430 = vsub.f32 0.0, %v414
        %v431 = vsub.f32 0.0, %v415
        %v432 = vsub.f32 0.0, %v416
        %v433 = vsub.f32 0.0, %v417
        %v434 = vsub.f32 0.0, %v418
        %v435 = vsub.f32 0.0, %v419
        %v436 = vsub.f32 0.0, %v420
        %v437 = vsub.f32 0.0, %v421
        %v438 = vsub.f32 0.0, %v422
        %v439 = vsub.f32 0.0, %v423
        %v440 = vsub.f32 0.0, %v424
        %v441 = vsub.f32 0.0, %v425
        %v442 = vsub.f32 0.0, %v426
        %v443 = vsub.f32 0.0, %v427
        %v444 = vsub.f32 0.0, %v428
        %v445 = vsub.f32 0.0, %v429
        %v446 = vmul.f32 %v430, 1.442695
        %v447 = vpow.pop %v446
        %v448 = vmul.f32 %v431, 1.442695
        %v449 = vpow.pop %v448
        %v450 = vmul.f32 %v432, 1.442695
        %v451 = vpow.pop %v450
        %v452 = vmul.f32 %v433, 1.442695
        %v453 = vpow.pop %v452
        %v454 = vmul.f32 %v434, 1.442695
        %v455 = vpow.pop %v454
        %v456 = vmul.f32 %v435, 1.442695
        %v457 = vpow.pop %v456
        %v458 = vmul.f32 %v436, 1.442695
        %v459 = vpow.pop %v458
        %v460 = vmul.f32 %v437, 1.442695
        %v461 = vpow.pop %v460
        %v462 = vmul.f32 %v438, 1.442695
        %v463 = vpow.pop %v462
        %v464 = vmul.f32 %v439, 1.442695
        %v465 = vpow.pop %v464
        %v466 = vmul.f32 %v440, 1.442695
        %v467 = vpow.pop %v466
        %v468 = vmul.f32 %v441, 1.442695
        %v469 = vpow.pop %v468
        %v470 = vmul.f32 %v442, 1.442695
        %v471 = vpow.pop %v470
        %v472 = vmul.f32 %v443, 1.442695
        %v473 = vpow.pop %v472
        %v474 = vmul.f32 %v444, 1.442695
        %v475 = vpow.pop %v474
        %v476 = vmul.f32 %v445, 1.442695
        %v477 = vpow.pop %v476
        %v478 = vadd.f32 %v447, 1.0
        %v479 = vadd.f32 %v449, 1.0
        %v480 = vadd.f32 %v451, 1.0
        %v481 = vadd.f32 %v453, 1.0
        %v482 = vadd.f32 %v455, 1.0
        %v483 = vadd.f32 %v457, 1.0
        %v484 = vadd.f32 %v459, 1.0
        %v485 = vadd.f32 %v461, 1.0
        %v486 = vadd.f32 %v463, 1.0
        %v487 = vadd.f32 %v465, 1.0
        %v488 = vadd.f32 %v467, 1.0
        %v489 = vadd.f32 %v469, 1.0
        %v490 = vadd.f32 %v471, 1.0
        %v491 = vadd.f32 %v473, 1.0
        %v492 = vadd.f32 %v475, 1.0
        %v493 = vadd.f32 %v477, 1.0
        %v494 = vrcp.pop %v478
        %v495 = vrcp.pop %v479
        %v496 = vrcp.pop %v480
        %v497 = vrcp.pop %v481
        %v498 = vrcp.pop %v482
        %v499 = vrcp.pop %v483
        %v500 = vrcp.pop %v484
        %v501 = vrcp.pop %v485
        %v502 = vrcp.pop %v486
        %v503 = vrcp.pop %v487
        %v504 = vrcp.pop %v488
        %v505 = vrcp.pop %v489
        %v506 = vrcp.pop %v490
        %v507 = vrcp.pop %v491
        %v508 = vrcp.pop %v492
        %v509 = vrcp.pop %v493
        %v510 = vadd.f32 %v494, 1.0
        %v511 = vadd.f32 %v495, 1.0
        %v512 = vadd.f32 %v496, 1.0
        %v513 = vadd.f32 %v497, 1.0
        %v514 = vadd.f32 %v498, 1.0
        %v515 = vadd.f32 %v499, 1.0
        %v516 = vadd.f32 %v500, 1.0
        %v517 = vadd.f32 %v501, 1.0
        %v518 = vadd.f32 %v502, 1.0
        %v519 = vadd.f32 %v503, 1.0
        %v520 = vadd.f32 %v504, 1.0
        %v521 = vadd.f32 %v505, 1.0
        %v522 = vadd.f32 %v506, 1.0
        %v523 = vadd.f32 %v507, 1.0
        %v524 = vadd.f32 %v508, 1.0
        %v525 = vadd.f32 %v509, 1.0
        %v526 = vmul.f32 %v268, %v510
        %v527 = vmul.f32 %v269, %v511
        %v528 = vmul.f32 %v270, %v512
        %v529 = vmul.f32 %v271, %v513
        %v530 = vmul.f32 %v272, %v514
        %v531 = vmul.f32 %v273, %v515
        %v532 = vmul.f32 %v274, %v516
        %v533 = vmul.f32 %v275, %v517
        %v534 = vmul.f32 %v276, %v518
        %v535 = vmul.f32 %v277, %v519
        %v536 = vmul.f32 %v278, %v520
        %v537 = vmul.f32 %v279, %v521
        %v538 = vmul.f32 %v280, %v522
        %v539 = vmul.f32 %v281, %v523
        %v540 = vmul.f32 %v282, %v524
        %v541 = vmul.f32 %v283, %v525
        %vm542 = vcmask 130048
        %543 = vst.msk [vmem:[%s251] sm:$0xff] %vm542, %v526
        %544 = vst.msk [vmem:[%s251 + $0x8] sm:$0xff] %vm542, %v527
        %545 = vst.msk [vmem:[%s251 + $0x10] sm:$0xff] %vm542, %v528
        %546 = vst.msk [vmem:[%s251 + $0x18] sm:$0xff] %vm542, %v529
        %547 = vst.msk [vmem:[%s251 + $0x20] sm:$0xff] %vm542, %v530
        %548 = vst.msk [vmem:[%s251 + $0x28] sm:$0xff] %vm542, %v531
        %549 = vst.msk [vmem:[%s251 + $0x30] sm:$0xff] %vm542, %v532
        %550 = vst.msk [vmem:[%s251 + $0x38] sm:$0xff] %vm542, %v533
        %551 = vst.msk [vmem:[%s251 + $0x40] sm:$0xff] %vm542, %v534
        %552 = vst.msk [vmem:[%s251 + $0x48] sm:$0xff] %vm542, %v535
        %553 = vst.msk [vmem:[%s251 + $0x50] sm:$0xff] %vm542, %v536
        %554 = vst.msk [vmem:[%s251 + $0x58] sm:$0xff] %vm542, %v537
        %555 = vst.msk [vmem:[%s251 + $0x60] sm:$0xff] %vm542, %v538
        %556 = vst.msk [vmem:[%s251 + $0x68] sm:$0xff] %vm542, %v539
        %557 = vst.msk [vmem:[%s251 + $0x70] sm:$0xff] %vm542, %v540
        %558 = vst.msk [vmem:[%s251 + $0x78] sm:$0xff] %vm542, %v541
        %s559 = sand.u32 %s126, 1
        %s560 = scalar_lea.sflag [#allocation4], %s559
        %s561 = sand.u32 %s126, 1
        %s562 = smul.addr %s561, 128
        %s563 = scalar_lea.vmem [#allocation5], %s562
        // Predicated region
        $region37: #{ah_attention_forward.3} parent=31 // pred_check
          %p564 = pneg %p136
        $region38: #{ah_attention_forward.3} parent=31 // pred_check_branch
          %566 = sbr.rel (%p564) target = $region40
        $region39: #{ah_attention_forward.3} parent=31 // pred_region
          %s567 = smul.u32 8, %s25
          %569 = vsyncadd %s560, 0
          %s570 = smul.addr %s567, 2
          %s571 = smul.addr %s24, 16
          %s572 = sadd.s32 %s570, %s571
          %s573 = smul.addr %s572, 8
          %s574 = scalar_lea.hbm %s3, %s573
          %s575 = sshll.u32 %s563, 4
          %s576 = int_to_ptr.vmem [resolvable:$true] %s575
          %s577 = sshll.u32 %s574, 4
          %s578 = int_to_ptr.hbm [resolvable:$true] %s577
          %583 = dma.vmem_to_hbm [thread:$0]  %s576, 2048, %s578, %s560, 128, 128, 8
        $region40: #{ah_attention_forward.3} parent=31 // pred_fallthru
          _
      $region32: #{ah_attention_forward.3} parent=5 // pred_fallthru
        _
      %p584 = scmp.le.s32.totalorder 2, %s15
      // Predicated region
      $region41: #{ah_attention_forward.3} parent=5 // pred_check
        %p585 = pneg %p584
      $region42: #{ah_attention_forward.3} parent=5 // pred_check_branch
        %587 = sbr.rel (%p585) target = $region44
      $region43: #{ah_attention_forward.3} parent=5 // pred_region
        %s588 = ssub.s32 %s15, 2
        // Predicated region
        $region45: #{ah_attention_forward.3} parent=43 // pred_check
          %p589 = pneg %p142
        $region46: #{ah_attention_forward.3} parent=43 // pred_check_branch
          %591 = sbr.rel (%p589) target = $region48
        $region47: #{ah_attention_forward.3} parent=43 // pred_region
          %s592 = sand.u32 %s127, 1
          %s593 = scalar_lea.sflag [#allocation4], %s592
          %s594 = sand.u32 %s127, 1
          %s595 = smul.addr %s594, 128
          %s596 = scalar_lea.vmem [#allocation5], %s595
          %598 = dma.done %s593, 2048
        $region48: #{ah_attention_forward.3} parent=43 // pred_fallthru
          _
      $region44: #{ah_attention_forward.3} parent=5 // pred_fallthru
        _
    $region6: #{ah_attention_forward.3} parent=1 // loop_footer
      %s19 = sadd.s32 1, %s15
    $region7: #{ah_attention_forward.3} parent=1 // loop_footer_branch
      %14 = sbr.rel target = $region3
    $region8: #{ah_attention_forward.3} parent=1 // loop_exit
      _
    %599 = vsyncpa [#allocation3], 1
    %s600 = scalar_lea.sflag [#allocation3], 1
    %601 = vsyncpa %s600, 1
    %602 = vsyncpa [#allocation4], 1
    %s603 = scalar_lea.sflag [#allocation4], 1
    %604 = vsyncpa %s603, 1

</llo_original>
